<compile_context>
chip_gen: v7x
topology: tpu7x:2x2x1
jax: 0.10.0
libtpu: 0.0.40
codegen_flags: <defaults>
</compile_context>

<pallas_src>
import functools

import jax
import jax.numpy as jnp
from jax import lax
from jax.experimental import pallas as pl
from jax.experimental.pallas import tpu as pltpu

LOG_SIG_MAX = 2.0
LOG_SIG_MIN = -20.0

LANE = 128
_BATCH_BLOCK = 256  # rows per grid step when B is large (keeps MXU fed)


def _actor_kernel(x_ref, w1_ref, b1_ref, w2_ref, b2_ref, wh_ref, bh_ref,
                  out_ref, *, action_dim):
    # fc1 (input normalization already folded into W1/b1 by the wrapper) + ReLU
    h1 = jnp.dot(x_ref[...], w1_ref[...],
                 preferred_element_type=jnp.float32) + b1_ref[...]
    h1 = jnp.maximum(h1, 0.0)

    # fc2 + ReLU
    h2 = jnp.dot(h1.astype(jnp.bfloat16), w2_ref[...],
                 preferred_element_type=jnp.float32) + b2_ref[...]
    h2 = jnp.maximum(h2, 0.0)

    # Fused heads: columns [0:A) = mu, [A:2A) = log_std, rest zero padding.
    heads = jnp.dot(h2.astype(jnp.bfloat16), wh_ref[...],
                    preferred_element_type=jnp.float32) + bh_ref[...]

    # Clamp only the log_std lanes (and the zero padding, where clamp(0) == 0).
    lane_idx = lax.broadcasted_iota(jnp.int32, heads.shape, 1)
    clipped = jnp.clip(heads, LOG_SIG_MIN, LOG_SIG_MAX)
    out_ref[...] = jnp.where(lane_idx >= action_dim, clipped, heads)


def actor_forward(x, xmean, xstd, params):
    """x: [B, state_dim] float32. Returns (mu, log_std), each [B, action_dim]."""
    B, state_dim = x.shape
    w1, b1, w2, b2, wmu, bmu, wls, bls = params
    hidden_dim = w1.shape[1]
    action_dim = wmu.shape[1]

    # --- fold (x - mean) / std into fc1 (done once, in f32, outside kernel) ---
    inv_std = 1.0 / xstd
    w1_f = w1 * inv_std[:, None]
    b1_f = b1 - (xmean * inv_std) @ w1

    # --- fuse the two heads into one lane-padded weight / bias ---
    n_heads = 2 * action_dim
    n_pad = ((n_heads + LANE - 1) // LANE) * LANE
    n_pad = max(n_pad, LANE)
    wh = jnp.zeros((hidden_dim, n_pad), jnp.float32)
    wh = wh.at[:, :action_dim].set(wmu).at[:, action_dim:n_heads].set(wls)
    bh = jnp.zeros((n_pad,), jnp.float32)
    bh = bh.at[:action_dim].set(bmu).at[action_dim:n_heads].set(bls)

    # --- batch tiling (grid over batch, "parallel" for megacore) ---
    if B > _BATCH_BLOCK:
        bt = _BATCH_BLOCK
        b_pad = ((B + bt - 1) // bt) * bt
    else:
        bt = B
        b_pad = B
    nb = b_pad // bt
    x_p = x if b_pad == B else jnp.pad(x, ((0, b_pad - B), (0, 0)))

    # --- bf16 MXU operands; biases stay f32 (f32 epilogue) ---
    x_bf = x_p.astype(jnp.bfloat16)
    w1_bf = w1_f.astype(jnp.bfloat16)
    w2_bf = w2.astype(jnp.bfloat16)
    wh_bf = wh.astype(jnp.bfloat16)
    b1_2d = b1_f.reshape(1, hidden_dim)
    b2_2d = b2.reshape(1, hidden_dim)
    bh_2d = bh.reshape(1, n_pad)

    kernel = functools.partial(_actor_kernel, action_dim=action_dim)

    out = pl.pallas_call(
        kernel,
        out_shape=jax.ShapeDtypeStruct((b_pad, n_pad), jnp.float32),
        grid=(nb,),
        in_specs=[
            pl.BlockSpec((bt, state_dim), lambda i: (i, 0)),          # x
            pl.BlockSpec((state_dim, hidden_dim), lambda i: (0, 0)),  # W1'
            pl.BlockSpec((1, hidden_dim), lambda i: (0, 0)),          # b1'
            pl.BlockSpec((hidden_dim, hidden_dim), lambda i: (0, 0)),  # W2
            pl.BlockSpec((1, hidden_dim), lambda i: (0, 0)),          # b2
            pl.BlockSpec((hidden_dim, n_pad), lambda i: (0, 0)),      # W_heads
            pl.BlockSpec((1, n_pad), lambda i: (0, 0)),               # b_heads
        ],
        out_specs=pl.BlockSpec((bt, n_pad), lambda i: (i, 0)),
        compiler_params=pltpu.CompilerParams(
            dimension_semantics=("parallel",)),
    )(x_bf, w1_bf, b1_2d, w2_bf, b2_2d, wh_bf, bh_2d)

    mu = out[:B, :action_dim]
    log_std = out[:B, action_dim:n_heads]
    return mu, log_std


def xavier_uniform(key, fan_in, fan_out, gain=1.0):
    # Matches torch.nn.init.xavier_uniform_ (gain=1).
    a = gain * jnp.sqrt(6.0 / (fan_in + fan_out))
    return jax.random.uniform(key, (fan_in, fan_out), jnp.float32, -a, a)


def init_actor_params(key, state_dim, action_dim, hidden_dim):
    k1, k2, k3, k4 = jax.random.split(key, 4)
    w1 = xavier_uniform(k1, state_dim, hidden_dim)
    b1 = jnp.zeros((hidden_dim,), jnp.float32)
    w2 = xavier_uniform(k2, hidden_dim, hidden_dim)
    b2 = jnp.zeros((hidden_dim,), jnp.float32)
    wmu = xavier_uniform(k3, hidden_dim, action_dim)
    bmu = jnp.zeros((action_dim,), jnp.float32)
    wls = xavier_uniform(k4, hidden_dim, action_dim)
    bls = jnp.zeros((action_dim,), jnp.float32)
    return (w1, b1, w2, b2, wmu, bmu, wls, bls)


def actor_forward_ref(x, xmean, xstd, params):
    """Pure-JAX f32 reference for correctness checking."""
    w1, b1, w2, b2, wmu, bmu, wls, bls = params
    xn = (x - xmean) / xstd
    h1 = jnp.maximum(xn @ w1 + b1, 0.0)
    h2 = jnp.maximum(h1 @ w2 + b2, 0.0)
    mu = h2 @ wmu + bmu
    log_std = jnp.clip(h2 @ wls + bls, LOG_SIG_MIN, LOG_SIG_MAX)
    return mu, log_std


if __name__ == "__main__":
    # Small shapes consistent with the module: batch=2, state_dim=8,
    # action_dim=4, hidden_dim=32 (module default is 256; kept small).
    B, state_dim, action_dim, hidden_dim = 2, 8, 4, 32

    key = jax.random.PRNGKey(0)
    kx, km, ks, kp = jax.random.split(key, 4)

    x = jax.random.normal(kx, (B, state_dim), jnp.float32)
    xmean = jax.random.normal(km, (state_dim,), jnp.float32) * 0.1
    xstd = jax.random.uniform(ks, (state_dim,), jnp.float32, 0.5, 1.5)

    params = init_actor_params(kp, state_dim, action_dim, hidden_dim)

    mu, log_std = actor_forward(x, xmean, xstd, params)
    jax.block_until_ready((mu, log_std))

    mu_ref, log_std_ref = actor_forward_ref(x, xmean, xstd, params)
    assert mu.shape == (B, action_dim) and log_std.shape == (B, action_dim)
    # bf16 matmul operands (f32 accumulation) -> compare at bf16-level tolerance.
    assert jnp.allclose(mu, mu_ref, atol=3e-2, rtol=3e-2)
    assert jnp.allclose(log_std, log_std_ref, atol=3e-2, rtol=3e-2)
    assert jnp.all(log_std >= LOG_SIG_MIN) and jnp.all(log_std <= LOG_SIG_MAX)

    # TODO(synk): is_discrete=True branch (softmax over logits) not exercised;
    # the module's default/continuous path is implemented here.
    print("KERNEL_OK")
</pallas_src>

<mosaic_0001>
module attributes {stable_mosaic.version = 11 : i64} {
  func.func @_actor_kernel(%arg0: i32, %arg1: memref<2x8xbf16, #tpu.memory_space<vmem>>, %arg2: memref<8x32xbf16, #tpu.memory_space<vmem>>, %arg3: memref<1x32xf32, #tpu.memory_space<vmem>>, %arg4: memref<32x32xbf16, #tpu.memory_space<vmem>>, %arg5: memref<1x32xf32, #tpu.memory_space<vmem>>, %arg6: memref<32x128xbf16, #tpu.memory_space<vmem>>, %arg7: memref<1x128xf32, #tpu.memory_space<vmem>>, %arg8: memref<2x128xf32, #tpu.memory_space<vmem>>) attributes {dimension_semantics = [#tpu.dimension_semantics<parallel>], iteration_bounds = array<i64: 1>, scalar_prefetch = 0 : i64, scratch_operands = 0 : i64, tpu.core_type = #tpu.core_type<tc>, window_params = [{transform_indices = @transform_0, window_bounds = array<i64: 2, 8>}, {pipeline_mode = #tpu.pipeline_mode<synchronous>, transform_indices = @transform_1, window_bounds = array<i64: 8, 32>}, {pipeline_mode = #tpu.pipeline_mode<synchronous>, transform_indices = @transform_2, window_bounds = array<i64: 1, 32>}, {pipeline_mode = #tpu.pipeline_mode<synchronous>, transform_indices = @transform_3, window_bounds = array<i64: 32, 32>}, {pipeline_mode = #tpu.pipeline_mode<synchronous>, transform_indices = @transform_4, window_bounds = array<i64: 1, 32>}, {pipeline_mode = #tpu.pipeline_mode<synchronous>, transform_indices = @transform_5, window_bounds = array<i64: 32, 128>}, {pipeline_mode = #tpu.pipeline_mode<synchronous>, transform_indices = @transform_6, window_bounds = array<i64: 1, 128>}, {transform_indices = @transform_7, window_bounds = array<i64: 2, 128>}]} {
    %c0 = arith.constant 0 : index
    %c0_0 = arith.constant 0 : index
    %0 = vector.load %arg1[%c0, %c0_0] : memref<2x8xbf16, #tpu.memory_space<vmem>>, vector<2x8xbf16>
    %c0_1 = arith.constant 0 : index
    %c0_2 = arith.constant 0 : index
    %1 = vector.load %arg2[%c0_1, %c0_2] : memref<8x32xbf16, #tpu.memory_space<vmem>>, vector<8x32xbf16>
    %cst = arith.constant dense<0.000000e+00> : vector<2x32xf32>
    %2 = tpu.matmul %0, %1, %cst {dimension_numbers = #tpu.dot_dimension_numbers<[1], [0], [0], [1], [0, 0, 1, 1], [], []>} : vector<2x8xbf16>, vector<8x32xbf16>, vector<2x32xf32> -> vector<2x32xf32>
    %c0_3 = arith.constant 0 : index
    %c0_4 = arith.constant 0 : index
    %3 = vector.load %arg3[%c0_3, %c0_4] : memref<1x32xf32, #tpu.memory_space<vmem>>, vector<1x32xf32>
    %4 = vector.broadcast %3 : vector<1x32xf32> to vector<2x32xf32>
    %5 = arith.addf %2, %4 : vector<2x32xf32>
    %cst_5 = arith.constant 0.000000e+00 : f32
    %6 = vector.broadcast %cst_5 : f32 to vector<2x32xf32>
    %7 = arith.maximumf %5, %6 : vector<2x32xf32>
    %8 = arith.truncf %7 : vector<2x32xf32> to vector<2x32xbf16>
    %c0_6 = arith.constant 0 : index
    %c0_7 = arith.constant 0 : index
    %9 = vector.load %arg4[%c0_6, %c0_7] : memref<32x32xbf16, #tpu.memory_space<vmem>>, vector<32x32xbf16>
    %cst_8 = arith.constant dense<0.000000e+00> : vector<2x32xf32>
    %10 = tpu.matmul %8, %9, %cst_8 {dimension_numbers = #tpu.dot_dimension_numbers<[1], [0], [0], [1], [0, 0, 1, 1], [], []>} : vector<2x32xbf16>, vector<32x32xbf16>, vector<2x32xf32> -> vector<2x32xf32>
    %c0_9 = arith.constant 0 : index
    %c0_10 = arith.constant 0 : index
    %11 = vector.load %arg5[%c0_9, %c0_10] : memref<1x32xf32, #tpu.memory_space<vmem>>, vector<1x32xf32>
    %12 = vector.broadcast %11 : vector<1x32xf32> to vector<2x32xf32>
    %13 = arith.addf %10, %12 : vector<2x32xf32>
    %cst_11 = arith.constant 0.000000e+00 : f32
    %14 = vector.broadcast %cst_11 : f32 to vector<2x32xf32>
    %15 = arith.maximumf %13, %14 : vector<2x32xf32>
    %16 = arith.truncf %15 : vector<2x32xf32> to vector<2x32xbf16>
    %c0_12 = arith.constant 0 : index
    %c0_13 = arith.constant 0 : index
    %17 = vector.load %arg6[%c0_12, %c0_13] : memref<32x128xbf16, #tpu.memory_space<vmem>>, vector<32x128xbf16>
    %cst_14 = arith.constant dense<0.000000e+00> : vector<2x128xf32>
    %18 = tpu.matmul %16, %17, %cst_14 {dimension_numbers = #tpu.dot_dimension_numbers<[1], [0], [0], [1], [0, 0, 1, 1], [], []>} : vector<2x32xbf16>, vector<32x128xbf16>, vector<2x128xf32> -> vector<2x128xf32>
    %c0_15 = arith.constant 0 : index
    %c0_16 = arith.constant 0 : index
    %19 = vector.load %arg7[%c0_15, %c0_16] : memref<1x128xf32, #tpu.memory_space<vmem>>, vector<1x128xf32>
    %20 = vector.broadcast %19 : vector<1x128xf32> to vector<2x128xf32>
    %21 = arith.addf %18, %20 : vector<2x128xf32>
    %22 = tpu.iota {dimensions = array<i32: 1>} : vector<2x128xi32>
    %cst_17 = arith.constant -2.000000e+01 : f32
    %cst_18 = arith.constant 2.000000e+00 : f32
    %23 = vector.broadcast %cst_17 : f32 to vector<2x128xf32>
    %24 = arith.maximumf %23, %21 : vector<2x128xf32>
    %25 = vector.broadcast %cst_18 : f32 to vector<2x128xf32>
    %26 = arith.minimumf %25, %24 : vector<2x128xf32>
    %c4_i32 = arith.constant 4 : i32
    %27 = vector.broadcast %c4_i32 : i32 to vector<2x128xi32>
    %28 = arith.cmpi sge, %22, %27 : vector<2x128xi32>
    %29 = arith.select %28, %26, %21 : vector<2x128xi1>, vector<2x128xf32>
    %c0_19 = arith.constant 0 : index
    %c0_20 = arith.constant 0 : index
    %30 = vector.load %arg8[%c0_19, %c0_20] : memref<2x128xf32, #tpu.memory_space<vmem>>, vector<2x128xf32>
    tpu.vector_store %arg8[%c0_19, %c0_20], %29 {strides = array<i32>} : memref<2x128xf32, #tpu.memory_space<vmem>>, vector<2x128xf32>,
    return
  }
  func.func @transform_0(%arg0: i32) -> (i32, i32) {
    %c0_i32 = arith.constant 0 : i32
    %c0_i32_0 = arith.constant 0 : i32
    return %arg0, %c0_i32 : i32, i32
  }
  func.func @transform_1(%arg0: i32) -> (i32, i32) {
    %c0_i32 = arith.constant 0 : i32
    %c0_i32_0 = arith.constant 0 : i32
    %c0_i32_1 = arith.constant 0 : i32
    return %c0_i32, %c0_i32_0 : i32, i32
  }
  func.func @transform_2(%arg0: i32) -> (i32, i32) {
    %c0_i32 = arith.constant 0 : i32
    %c0_i32_0 = arith.constant 0 : i32
    %c0_i32_1 = arith.constant 0 : i32
    return %c0_i32, %c0_i32_0 : i32, i32
  }
  func.func @transform_3(%arg0: i32) -> (i32, i32) {
    %c0_i32 = arith.constant 0 : i32
    %c0_i32_0 = arith.constant 0 : i32
    %c0_i32_1 = arith.constant 0 : i32
    return %c0_i32, %c0_i32_0 : i32, i32
  }
  func.func @transform_4(%arg0: i32) -> (i32, i32) {
    %c0_i32 = arith.constant 0 : i32
    %c0_i32_0 = arith.constant 0 : i32
    %c0_i32_1 = arith.constant 0 : i32
    return %c0_i32, %c0_i32_0 : i32, i32
  }
  func.func @transform_5(%arg0: i32) -> (i32, i32) {
    %c0_i32 = arith.constant 0 : i32
    %c0_i32_0 = arith.constant 0 : i32
    %c0_i32_1 = arith.constant 0 : i32
    return %c0_i32, %c0_i32_0 : i32, i32
  }
  func.func @transform_6(%arg0: i32) -> (i32, i32) {
    %c0_i32 = arith.constant 0 : i32
    %c0_i32_0 = arith.constant 0 : i32
    %c0_i32_1 = arith.constant 0 : i32
    return %c0_i32, %c0_i32_0 : i32, i32
  }
  func.func @transform_7(%arg0: i32) -> (i32, i32) {
    %c0_i32 = arith.constant 0 : i32
    %c0_i32_0 = arith.constant 0 : i32
    return %arg0, %c0_i32 : i32, i32
  }
}

</mosaic_0001>

<llo_original>
// kernel: tpu_custom_call.1
$region0: #{tpu_custom_call.1}
  #allocation0 [shape = 'u32[]', space=smem, size = 0x4, offset = 0x4, fixed_abs, tag = 'smem constant byte address 0x4 - core index']
  #allocation1 [shape = 'u32[144,128]{1,0:T(1,128)}', space=vmem, size = 0x12000, scoped, tag = 'internal scratch']
  %s0 = inlined_call_operand.hbm [shape: bf16[2,8], index: 0, kind: input, shape index: {}]
  %s1 = inlined_call_operand.hbm [shape: bf16[8,32], index: 1, kind: input, shape index: {}]
  %s2 = inlined_call_operand.vmem [shape: f32[1,32], index: 2, kind: input, shape index: {}]
  %s3 = inlined_call_operand.hbm [shape: bf16[32,32], index: 3, kind: input, shape index: {}]
  %s4 = inlined_call_operand.vmem [shape: f32[1,32], index: 4, kind: input, shape index: {}]
  %s5 = inlined_call_operand.vmem [shape: bf16[32,128], index: 5, kind: input, shape index: {}]
  %s6 = inlined_call_operand.vmem [shape: f32[1,128], index: 6, kind: input, shape index: {}]
  %s7 = inlined_call_operand.hbm [shape: f32[2,128], index: 7, kind: output, shape index: {}]
  %s8 = sld [smem:[#allocation0]]
  $region50: #{tpu_custom_call.1} parent=0
    _
  %s10 = ssub.s32 1, %s8
  %s11 = scalar_select 0, %s10, %s8
  $region1: #{tpu_custom_call.1} parent=0
    #allocation2 [shape = 'u8[512]{0}', space=vmem, size = 0x400, scoped, tag = 'input window, operand 0, single buffered']
    #allocation3 [shape = 's32[1]{0}', space=sflag, size = 0x4, scoped, tag = 'scoped memory for tpu_custom_call.1']
    #allocation4 [shape = 's32[1]{0}', space=sflag, size = 0x4, scoped, tag = 'scoped memory for tpu_custom_call.1']
    #allocation5 [shape = 'u8[2048]{0}', space=vmem, size = 0x800, scoped, tag = 'input window, operand 1, single buffered']
    #allocation6 [shape = 's32[1]{0}', space=sflag, size = 0x4, scoped, tag = 'scoped memory for tpu_custom_call.1']
    #allocation7 [shape = 'u8[8192]{0}', space=vmem, size = 0x2000, scoped, tag = 'input window, operand 3, single buffered']
    #allocation8 [shape = 'u8[1024]{0}', space=vmem, size = 0x400, scoped, tag = 'output window, operand 0, single buffered']
    %12 = vsyncpa [#allocation3], 0
    %13 = vsyncpa [#allocation6], 0
    %14 = vsyncpa [#allocation4], 0
    // Predicated region
    $region2: #{tpu_custom_call.1} parent=1 // pred_check
      _
    $region3: #{tpu_custom_call.1} parent=1 // pred_check_branch
      %16 = sbr.rel (0) target = $region5
    $region4: #{tpu_custom_call.1} parent=1 // pred_region
      %s18 = ssub.s32 16, 16
      %19 = vsyncadd [#allocation3], %s18
      %s21 = sshll.u32 [#allocation2], 4
      %s22 = int_to_ptr.vmem [resolvable:$true] %s21
      %24 = dma.hbm_to_vmem [thread:$0]  %s0, 16, %s22, [#allocation3]
    $region5: #{tpu_custom_call.1} parent=1 // pred_fallthru
      _
    // Predicated region
    $region6: #{tpu_custom_call.1} parent=1 // pred_check
      _
    $region7: #{tpu_custom_call.1} parent=1 // pred_check_branch
      %26 = sbr.rel (0) target = $region9
    $region8: #{tpu_custom_call.1} parent=1 // pred_region
      %s28 = ssub.s32 64, 64
      %29 = vsyncadd [#allocation6], %s28
      %s31 = sshll.u32 [#allocation5], 4
      %s32 = int_to_ptr.vmem [resolvable:$true] %s31
      %34 = dma.hbm_to_vmem [thread:$0]  %s1, 64, %s32, [#allocation6]
    $region9: #{tpu_custom_call.1} parent=1 // pred_fallthru
      _
    // Predicated region
    $region10: #{tpu_custom_call.1} parent=1 // pred_check
      _
    $region11: #{tpu_custom_call.1} parent=1 // pred_check_branch
      %36 = sbr.rel (0) target = $region13
    $region12: #{tpu_custom_call.1} parent=1 // pred_region
      _
    $region13: #{tpu_custom_call.1} parent=1 // pred_fallthru
      _
    // Predicated region
    $region14: #{tpu_custom_call.1} parent=1 // pred_check
      _
    $region15: #{tpu_custom_call.1} parent=1 // pred_check_branch
      %38 = sbr.rel (0) target = $region17
    $region16: #{tpu_custom_call.1} parent=1 // pred_region
      %s40 = ssub.s32 256, 256
      %41 = vsyncadd [#allocation6], %s40
      %s42 = sshll.u32 [#allocation7], 4
      %s43 = int_to_ptr.vmem [resolvable:$true] %s42
      %48 = dma.hbm_to_vmem [thread:$0]  %s3, 256, %s43, [#allocation6], 64, 64, 4
    $region17: #{tpu_custom_call.1} parent=1 // pred_fallthru
      _
    // Predicated region
    $region18: #{tpu_custom_call.1} parent=1 // pred_check
      _
    $region19: #{tpu_custom_call.1} parent=1 // pred_check_branch
      %50 = sbr.rel (0) target = $region21
    $region20: #{tpu_custom_call.1} parent=1 // pred_region
      _
    $region21: #{tpu_custom_call.1} parent=1 // pred_fallthru
      _
    // Predicated region
    $region22: #{tpu_custom_call.1} parent=1 // pred_check
      _
    $region23: #{tpu_custom_call.1} parent=1 // pred_check_branch
      %52 = sbr.rel (0) target = $region25
    $region24: #{tpu_custom_call.1} parent=1 // pred_region
      _
    $region25: #{tpu_custom_call.1} parent=1 // pred_fallthru
      _
    // Predicated region
    $region26: #{tpu_custom_call.1} parent=1 // pred_check
      _
    $region27: #{tpu_custom_call.1} parent=1 // pred_check_branch
      %54 = sbr.rel (0) target = $region29
    $region28: #{tpu_custom_call.1} parent=1 // pred_region
      _
    $region29: #{tpu_custom_call.1} parent=1 // pred_fallthru
      _
    // Predicated region
    $region30: #{tpu_custom_call.1} parent=1 // pred_check
      _
    $region31: #{tpu_custom_call.1} parent=1 // pred_check_branch
      %56 = sbr.rel (0) target = $region33
    $region32: #{tpu_custom_call.1} parent=1 // pred_region
      %57 = dma.done [#allocation3], 16
    $region33: #{tpu_custom_call.1} parent=1 // pred_fallthru
      _
    // Predicated region
    $region34: #{tpu_custom_call.1} parent=1 // pred_check
      _
    $region35: #{tpu_custom_call.1} parent=1 // pred_check_branch
      %59 = sbr.rel (0) target = $region37
    $region36: #{tpu_custom_call.1} parent=1 // pred_region
      %60 = dma.done [#allocation6], 64
    $region37: #{tpu_custom_call.1} parent=1 // pred_fallthru
      _
    // Predicated region
    $region38: #{tpu_custom_call.1} parent=1 // pred_check
      _
    $region39: #{tpu_custom_call.1} parent=1 // pred_check_branch
      %62 = sbr.rel (0) target = $region41
    $region40: #{tpu_custom_call.1} parent=1 // pred_region
      %63 = dma.done [#allocation6], 256
    $region41: #{tpu_custom_call.1} parent=1 // pred_fallthru
      _
    %v65 = vld [vmem:[#allocation2] sm:$0x1]
    %v66 = vld [vmem:[#allocation5] sm:$0xf]
    %v67 = vld [vmem:[%s2] sm:$0x1]
    %v69 = vlaneseq
    %v70 = vshrl.u32 %v69, 7
    %v71 = vsub.s32 0, %v70
    %v72 = vrot.slane %v67, %v71
    %vm74 = vcmask 64512
    %v76 = vsel %vm74, %v65, 0
    %vm78 = vcmask 1043456
    %v80 = vsel %vm78, %v66, 0
    %82 = vmatprep.subr.bf16.mxu0 0
    %83 = vmatpush1.bf16.msra.mxu0 %v80
    %84 = vmatprep.subr.bf16.mxu0 0
    %85 = vmatpush1.bf16.msra.mxu0 0
    %86 = vmatprep.subr.bf16.mxu0 0
    %87 = vmatpush1.bf16.msra.mxu0 0
    %88 = vmatprep.subr.bf16.mxu0 0
    %89 = vmatpush1.bf16.msra.mxu0 0
    %90 = vmatprep.subr.bf16.mxu0 0
    %91 = vmatpush1.bf16.msra.mxu0 0
    %92 = vmatprep.subr.bf16.mxu0 0
    %93 = vmatpush1.bf16.msra.mxu0 0
    %94 = vmatprep.subr.bf16.mxu0 0
    %95 = vmatpush1.bf16.msra.mxu0 0
    %96 = vmatprep.subr.bf16.mxu0 0
    %97 = vmatpush1.bf16.msra.mxu0 0
    %98 = vmatprep.subr.bf16.mxu0 0
    %99 = vmatpush1.bf16.msra.mxu0 0
    %100 = vmatprep.subr.bf16.mxu0 0
    %101 = vmatpush1.bf16.msra.mxu0 0
    %102 = vmatprep.subr.bf16.mxu0 0
    %103 = vmatpush1.bf16.msra.mxu0 0
    %104 = vmatprep.subr.bf16.mxu0 0
    %105 = vmatpush1.bf16.msra.mxu0 0
    %106 = vmatprep.subr.bf16.mxu0 0
    %107 = vmatpush1.bf16.msra.mxu0 0
    %108 = vmatprep.subr.bf16.mxu0 0
    %109 = vmatpush1.bf16.msra.mxu0 0
    %110 = vmatprep.subr.bf16.mxu0 0
    %111 = vmatpush1.bf16.msra.mxu0 0
    %112 = vmatprep.subr.bf16.mxu0 0
    %113 = vmatpush1.bf16.msra.mxu0 0
    %114 = vmatprep.mubr.bf16.mxu0 0
    %115 = vmatmul.mubr.bf16.gmra.mrb[0].mxu0 %v76
    %v116 = vpop.f32.mrb[0].mxu0
    %v117 = vadd.f32 %v72, %v116
    %v118 = vpop.f32.mrb[0].mxu0
    %v119 = vpop.f32.mrb[0].mxu0
    %v120 = vpop.f32.mrb[0].mxu0
    %121 = vdwg.mxu0
    %v122 = vmax.f32 %v117, 0.0
    %v123 = vpack.c.bf16 %v122, %v122
    %v124 = vld [vmem:[#allocation7] sm:$0xf]
    %v125 = vld [vmem:[#allocation7 + $0x4] sm:$0xf]
    %v126 = vld [vmem:[#allocation7 + $0x8] sm:$0xf]
    %v127 = vld [vmem:[#allocation7 + $0xc] sm:$0xf]
    %v128 = vld [vmem:[%s4] sm:$0x1]
    %v130 = vlaneseq
    %v131 = vshrl.u32 %v130, 7
    %v132 = vsub.s32 0, %v131
    %v133 = vrot.slane %v128, %v132
    %v139 = vunpack.c.l.b16 %v124
    %v140 = vunpack.c.l.b16 %v125
    %v141 = vunpack.c.l.b16 %v126
    %v142 = vunpack.c.l.b16 %v127
    %v143 = vpack.c.b16 %v140, %v139
    %v144 = vpack.c.b16 %v142, %v141
    %vm147 = vcmask 261120
    %v149 = vsel %vm147, %v123, 0
    %151 = vmatprep.subr.bf16.mxu0 0
    %152 = vmatpush1.bf16.msra.mxu0 %v143
    %153 = vmatprep.subr.bf16.mxu0 0
    %154 = vmatpush1.bf16.msra.mxu0 %v144
    %155 = vmatprep.subr.bf16.mxu0 0
    %156 = vmatpush1.bf16.msra.mxu0 0
    %157 = vmatprep.subr.bf16.mxu0 0
    %158 = vmatpush1.bf16.msra.mxu0 0
    %159 = vmatprep.subr.bf16.mxu0 0
    %160 = vmatpush1.bf16.msra.mxu0 0
    %161 = vmatprep.subr.bf16.mxu0 0
    %162 = vmatpush1.bf16.msra.mxu0 0
    %163 = vmatprep.subr.bf16.mxu0 0
    %164 = vmatpush1.bf16.msra.mxu0 0
    %165 = vmatprep.subr.bf16.mxu0 0
    %166 = vmatpush1.bf16.msra.mxu0 0
    %167 = vmatprep.subr.bf16.mxu0 0
    %168 = vmatpush1.bf16.msra.mxu0 0
    %169 = vmatprep.subr.bf16.mxu0 0
    %170 = vmatpush1.bf16.msra.mxu0 0
    %171 = vmatprep.subr.bf16.mxu0 0
    %172 = vmatpush1.bf16.msra.mxu0 0
    %173 = vmatprep.subr.bf16.mxu0 0
    %174 = vmatpush1.bf16.msra.mxu0 0
    %175 = vmatprep.subr.bf16.mxu0 0
    %176 = vmatpush1.bf16.msra.mxu0 0
    %177 = vmatprep.subr.bf16.mxu0 0
    %178 = vmatpush1.bf16.msra.mxu0 0
    %179 = vmatprep.subr.bf16.mxu0 0
    %180 = vmatpush1.bf16.msra.mxu0 0
    %181 = vmatprep.subr.bf16.mxu0 0
    %182 = vmatpush1.bf16.msra.mxu0 0
    %183 = vmatprep.mubr.bf16.mxu0 0
    %184 = vmatmul.mubr.bf16.gmra.mrb[0].mxu0 %v149
    %v185 = vpop.f32.mrb[0].mxu0
    %v186 = vadd.f32 %v133, %v185
    %v187 = vpop.f32.mrb[0].mxu0
    %v188 = vpop.f32.mrb[0].mxu0
    %v189 = vpop.f32.mrb[0].mxu0
    %190 = vdwg.mxu0
    %v191 = vmax.f32 %v186, 0.0
    %v192 = vpack.c.bf16 %v191, %v191
    %v193 = vld [vmem:[%s5] sm:$0xf]
    %v194 = vld [vmem:[%s5 + $0x4] sm:$0xf]
    %v195 = vld [vmem:[%s5 + $0x8] sm:$0xf]
    %v196 = vld [vmem:[%s5 + $0xc] sm:$0xf]
    %v197 = vld [vmem:[%s6] sm:$0x1]
    %v199 = vlaneseq
    %v200 = vshrl.u32 %v199, 7
    %v201 = vsub.s32 0, %v200
    %v202 = vrot.slane %v197, %v201
    %v208 = vunpack.c.l.b16 %v193
    %v209 = vunpack.c.l.b16 %v194
    %v210 = vunpack.c.l.b16 %v195
    %v211 = vunpack.c.l.b16 %v196
    %v212 = vpack.c.b16 %v209, %v208
    %v213 = vpack.c.b16 %v211, %v210
    %v217 = vsel %vm147, %v192, 0
    %219 = vmatprep.subr.bf16.mxu0 0
    %220 = vmatpush1.bf16.msra.mxu0 %v212
    %221 = vmatprep.subr.bf16.mxu0 0
    %222 = vmatpush1.bf16.msra.mxu0 %v213
    %223 = vmatprep.subr.bf16.mxu0 0
    %224 = vmatpush1.bf16.msra.mxu0 0
    %225 = vmatprep.subr.bf16.mxu0 0
    %226 = vmatpush1.bf16.msra.mxu0 0
    %227 = vmatprep.subr.bf16.mxu0 0
    %228 = vmatpush1.bf16.msra.mxu0 0
    %229 = vmatprep.subr.bf16.mxu0 0
    %230 = vmatpush1.bf16.msra.mxu0 0
    %231 = vmatprep.subr.bf16.mxu0 0
    %232 = vmatpush1.bf16.msra.mxu0 0
    %233 = vmatprep.subr.bf16.mxu0 0
    %234 = vmatpush1.bf16.msra.mxu0 0
    %235 = vmatprep.subr.bf16.mxu0 0
    %236 = vmatpush1.bf16.msra.mxu0 0
    %237 = vmatprep.subr.bf16.mxu0 0
    %238 = vmatpush1.bf16.msra.mxu0 0
    %239 = vmatprep.subr.bf16.mxu0 0
    %240 = vmatpush1.bf16.msra.mxu0 0
    %241 = vmatprep.subr.bf16.mxu0 0
    %242 = vmatpush1.bf16.msra.mxu0 0
    %243 = vmatprep.subr.bf16.mxu0 0
    %244 = vmatpush1.bf16.msra.mxu0 0
    %245 = vmatprep.subr.bf16.mxu0 0
    %246 = vmatpush1.bf16.msra.mxu0 0
    %247 = vmatprep.subr.bf16.mxu0 0
    %248 = vmatpush1.bf16.msra.mxu0 0
    %249 = vmatprep.subr.bf16.mxu0 0
    %250 = vmatpush1.bf16.msra.mxu0 0
    %251 = vmatprep.mubr.bf16.mxu0 0
    %252 = vmatmul.mubr.bf16.gmra.mrb[0].mxu0 %v217
    %v253 = vpop.f32.mrb[0].mxu0
    %v254 = vadd.f32 %v202, %v253
    %v255 = vpop.f32.mrb[0].mxu0
    %v256 = vpop.f32.mrb[0].mxu0
    %v257 = vpop.f32.mrb[0].mxu0
    %258 = vdwg.mxu0
    %v259 = vlaneseq
    %v260 = vand.u32 %v259, 127
    %v261 = vmax.f32 %v254, -20.0
    %v262 = vmin.f32 %v261, 2.0
    %vm263 = vcmp.ge.s32.totalorder %v260, 4
    %v264 = vsel %vm263, %v262, %v254
    %265 = vst [vmem:[#allocation8] sm:$0x3] %v264
    // Predicated region
    $region42: #{tpu_custom_call.1} parent=1 // pred_check
      _
    $region43: #{tpu_custom_call.1} parent=1 // pred_check_branch
      %267 = sbr.rel (0) target = $region45
    $region44: #{tpu_custom_call.1} parent=1 // pred_region
      %s269 = ssub.s32 32, 32
      %270 = vsyncadd [#allocation4], %s269
      %s272 = sshll.u32 [#allocation8], 4
      %s273 = int_to_ptr.vmem [resolvable:$true] %s272
      %275 = dma.vmem_to_hbm [thread:$0]  %s273, 32, %s7, [#allocation4]
    $region45: #{tpu_custom_call.1} parent=1 // pred_fallthru
      _
    // Predicated region
    $region46: #{tpu_custom_call.1} parent=1 // pred_check
      _
    $region47: #{tpu_custom_call.1} parent=1 // pred_check_branch
      %277 = sbr.rel (0) target = $region49
    $region48: #{tpu_custom_call.1} parent=1 // pred_region
      %278 = dma.done [#allocation4], 32
    $region49: #{tpu_custom_call.1} parent=1 // pred_fallthru
      _
    %279 = vsyncpa [#allocation3], 1
    %280 = vsyncpa [#allocation6], 1
    %281 = vsyncpa [#allocation4], 1

</llo_original>
